<compile_context>
chip_gen: v5e
topology: v5e:2x2
jax: 0.10.0
libtpu: 0.0.40
codegen_flags: <defaults>
</compile_context>

<pallas_src>
import jax
import jax.numpy as jnp
from jax.experimental import pallas as pl
from jax.experimental.pallas import tpu as pltpu

EPS = 1e-5


def _adaln_kernel(x_ref, mod_ref, o_ref):
    # x_ref: (bB, tS, D), mod_ref: (bB, 2, D) f32 [scale; shift], o_ref: (bB, tS, D)
    x = x_ref[...].astype(jnp.float32)                        # (bB, tS, D)

    # LayerNorm statistics over the last dim (biased variance, eps inside rsqrt
    # -- matches torch.nn.LayerNorm).
    mean = jnp.mean(x, axis=-1, keepdims=True)                # (bB, tS, 1)
    xc = x - mean
    var = jnp.mean(xc * xc, axis=-1, keepdims=True)           # (bB, tS, 1)
    r = jax.lax.rsqrt(var + EPS)                              # (bB, tS, 1)

    mod = mod_ref[...]                                        # (bB, 2, D) f32
    scale = mod[:, 0:1, :]                                    # (bB, 1, D)
    shift = mod[:, 1:2, :]                                    # (bB, 1, D)

    # Fused LN-affine + modulation: (x - mean) * r * scale + shift.
    o_ref[...] = ((xc * r) * scale + shift).astype(o_ref.dtype)


def _choose_tiles(B: int, S: int, D: int, itemsize: int):
    """Pick (bB, tS) block dims from D, dtype, and a per-step VMEM budget.

    Per-step VMEM ~= bB*tS*D * (4*itemsize + 8):
      2x double-buffered input block + 2x output block (itemsize each)
      + ~2 full-tile f32 temporaries (the upcast tile and the centered tile).
    """
    VMEM_BUDGET = 40 << 20      # pipelined buffers + temps; safe under v7x's 64 MiB
    TARGET_X_BLOCK = 4 << 20    # ~4 MiB of x traffic per grid step
    MIN_STEPS = 8               # enough steps for pipelining / v7x core sharding

    per_row_x = D * itemsize
    per_row_vmem = D * (4 * itemsize + 8)
    rows = min(max(8, VMEM_BUDGET // per_row_vmem),
               max(8, TARGET_X_BLOCK // per_row_x))

    if S > rows:
        # Tile the sequence. Prefer a multiple-of-8 divisor of S so every tile
        # (including the last) is dense -> unmasked stores.
        start = (rows // 8) * 8
        tS = 0
        for cand in range(start, 7, -8):
            if S % cand == 0:
                tS = cand
                break
        if tS == 0:
            # TODO(synk): no multiple-of-8 divisor of S <= rows; last tile is
            # ragged (masked stores on that tile only) -- correctness unaffected.
            tS = max(8, start)
        bB = 1
    else:
        tS = S
        # Pack several batch rows per block, but keep >= MIN_STEPS grid steps
        # when the problem allows, so the pipeline has depth.
        bB = max(1, min(B, rows // max(S, 1)))
        while bB > 1 and pl.cdiv(B, bB) < MIN_STEPS:
            bB = max(1, bB // 2)
        # Prefer bB dividing B so every batch block is dense.
        while B % bB != 0:
            bB -= 1
    return bB, tS


@jax.jit
def adaptive_layer_norm_1d(x, t, ln_weight, ln_bias, lin_weight, lin_bias):
    """x: (B, S, D), t: (B, C).
    ln_weight, ln_bias: (D,).  lin_weight: (2D, C) [torch layout], lin_bias: (2D,)."""
    # TODO(synk): only the x.dim() > 2 branch of the PyTorch forward is implemented.
    assert x.ndim == 3, "adaptive_layer_norm_1d expects (B, S, D) inputs"
    B, S, D = x.shape
    C = t.shape[-1]
    assert lin_weight.shape == (2 * D, C) and lin_bias.shape == (2 * D,)

    # --- Hoisted conditioning projection (tiny: O(B*C*D)) -------------------
    # alpha, beta = (t @ W^T + b).chunk(2, -1)  (matches torch.nn.Linear + chunk)
    ab = (jnp.dot(t.astype(jnp.float32),
                  jnp.transpose(lin_weight).astype(jnp.float32),
                  preferred_element_type=jnp.float32)
          + lin_bias.astype(jnp.float32))                     # (B, 2D)
    alpha, beta = ab[:, :D], ab[:, D:]

    # Fold LayerNorm affine into the modulation:
    #   out = ((x-mean)*rsqrt*gamma + bln) * (1+alpha) + beta
    #       = (x-mean)*rsqrt * [gamma*(1+alpha)] + [bln*(1+alpha) + beta]
    one_p_alpha = 1.0 + alpha
    scale = ln_weight.astype(jnp.float32)[None, :] * one_p_alpha           # (B, D)
    shift = ln_bias.astype(jnp.float32)[None, :] * one_p_alpha + beta      # (B, D)
    mod = jnp.stack([scale, shift], axis=1)                                # (B, 2, D)

    # --- Fused normalize + modulate kernel, tiled over (B, S) ---------------
    itemsize = jnp.dtype(x.dtype).itemsize
    bB, tS = _choose_tiles(B, S, D, itemsize)
    grid = (pl.cdiv(B, bB), pl.cdiv(S, tS))

    # TODO(synk): for D not a multiple of 128 (as in this tiny test, D=32) output
    # stores are masked vst.msk; real model dims (512-1024) are already lane-dense.
    grid_spec = pltpu.PrefetchScalarGridSpec(
        num_scalar_prefetch=0,
        grid=grid,
        in_specs=[
            pl.BlockSpec((bB, tS, D), lambda b, s: (b, s, 0)),   # x tile
            pl.BlockSpec((bB, 2, D), lambda b, s: (b, 0, 0)),    # fused scale/shift
        ],
        out_specs=pl.BlockSpec((bB, tS, D), lambda b, s: (b, s, 0)),
    )

    # Scoped-VMEM limit: enough for our pipelined buffers + f32 temps, but kept
    # <= 48 MiB so it is safe on every generation (v7x physical VMEM is 64 MiB).
    est_vmem = bB * tS * D * (4 * itemsize + 8) + (1 << 20)
    vmem_limit = int(min(max(est_vmem, 16 << 20), 48 << 20))

    cost = pl.CostEstimate(
        flops=7 * B * S * D,
        transcendentals=B * S,
        bytes_accessed=2 * B * S * D * itemsize + mod.size * 4,
    )

    return pl.pallas_call(
        _adaln_kernel,
        out_shape=jax.ShapeDtypeStruct((B, S, D), x.dtype),
        grid_spec=grid_spec,
        compiler_params=pltpu.CompilerParams(
            # Both axes are embarrassingly parallel (independent LN rows);
            # lets the grid shard across both TensorCores on v7x.
            dimension_semantics=("parallel", "parallel"),
            vmem_limit_bytes=vmem_limit,
        ),
        cost_estimate=cost,
    )(x, mod)


def _reference(x, t, ln_weight, ln_bias, lin_weight, lin_bias):
    D = x.shape[-1]
    mean = jnp.mean(x, axis=-1, keepdims=True)
    var = jnp.mean((x - mean) ** 2, axis=-1, keepdims=True)
    xn = (x - mean) / jnp.sqrt(var + EPS) * ln_weight + ln_bias
    ab = t @ lin_weight.T + lin_bias
    alpha, beta = ab[:, :D], ab[:, D:]
    return xn * (1.0 + alpha[:, None, :]) + beta[:, None, :]


if __name__ == "__main__":
    B, S, D, C = 2, 8, 32, 16   # batch, seq, data_dim, norm_cond_dim

    key = jax.random.PRNGKey(0)
    kx, kt, kw, kb, kg, kbl = jax.random.split(key, 6)

    x = jax.random.normal(kx, (B, S, D), dtype=jnp.float32)
    t = jax.random.normal(kt, (B, C), dtype=jnp.float32)

    # Parameters (deterministic). NOTE: the PyTorch module zero-inits the linear
    # layer; we use small non-zero deterministic values so the conditioning path
    # is actually exercised. LayerNorm affine defaults are weight=1, bias=0; we
    # use non-trivial values to test the affine path.
    ln_weight = 1.0 + 0.1 * jax.random.normal(kg, (D,), dtype=jnp.float32)
    ln_bias = 0.1 * jax.random.normal(kbl, (D,), dtype=jnp.float32)
    lin_weight = 0.05 * jax.random.normal(kw, (2 * D, C), dtype=jnp.float32)
    lin_bias = 0.05 * jax.random.normal(kb, (2 * D,), dtype=jnp.float32)

    out = adaptive_layer_norm_1d(x, t, ln_weight, ln_bias, lin_weight, lin_bias)
    out = jax.block_until_ready(out)

    ref = _reference(x, t, ln_weight, ln_bias, lin_weight, lin_bias)
    assert out.shape == (B, S, D)
    assert jnp.allclose(out, ref, atol=1e-5, rtol=1e-5), "mismatch vs JAX reference"

    print("KERNEL_OK")
</pallas_src>

<mosaic_0001>
module attributes {stable_mosaic.version = 11 : i64} {
  func.func @_adaln_kernel(%arg0: i32, %arg1: i32, %arg2: memref<1x8x32xf32, #tpu.memory_space<vmem>>, %arg3: memref<1x2x32xf32, #tpu.memory_space<vmem>>, %arg4: memref<1x8x32xf32, #tpu.memory_space<vmem>>) attributes {dimension_semantics = [#tpu.dimension_semantics<parallel>, #tpu.dimension_semantics<parallel>], iteration_bounds = array<i64: 2, 1>, scalar_prefetch = 0 : i64, scratch_operands = 0 : i64, tpu.core_type = #tpu.core_type<tc>, window_params = [{transform_indices = @transform_0, window_bounds = array<i64: 1, 8, 32>}, {transform_indices = @transform_1, window_bounds = array<i64: 1, 2, 32>}, {transform_indices = @transform_2, window_bounds = array<i64: 1, 8, 32>}]} {
    %c0 = arith.constant 0 : index
    %c0_0 = arith.constant 0 : index
    %c0_1 = arith.constant 0 : index
    %0 = vector.load %arg2[%c0, %c0_0, %c0_1] : memref<1x8x32xf32, #tpu.memory_space<vmem>>, vector<1x8x32xf32>
    %cst = arith.constant dense<0.000000e+00> : vector<1x8xf32>
    %1 = vector.multi_reduction <add>, %0, %cst [2] : vector<1x8x32xf32> to vector<1x8xf32>
    %2 = vector.shape_cast %1 : vector<1x8xf32> to vector<1x8x1xf32>
    %cst_2 = arith.constant 3.200000e+01 : f32
    %3 = vector.broadcast %cst_2 : f32 to vector<1x8x1xf32>
    %4 = arith.divf %2, %3 : vector<1x8x1xf32>
    %5 = vector.broadcast %4 : vector<1x8x1xf32> to vector<1x8x32xf32>
    %6 = arith.subf %0, %5 : vector<1x8x32xf32>
    %7 = arith.mulf %6, %6 : vector<1x8x32xf32>
    %cst_3 = arith.constant dense<0.000000e+00> : vector<1x8xf32>
    %8 = vector.multi_reduction <add>, %7, %cst_3 [2] : vector<1x8x32xf32> to vector<1x8xf32>
    %9 = vector.shape_cast %8 : vector<1x8xf32> to vector<1x8x1xf32>
    %cst_4 = arith.constant 3.200000e+01 : f32
    %10 = vector.broadcast %cst_4 : f32 to vector<1x8x1xf32>
    %11 = arith.divf %9, %10 : vector<1x8x1xf32>
    %cst_5 = arith.constant 9.99999974E-6 : f32
    %12 = vector.broadcast %cst_5 : f32 to vector<1x8x1xf32>
    %13 = arith.addf %11, %12 : vector<1x8x1xf32>
    %14 = math.rsqrt %13 : vector<1x8x1xf32>
    %c0_6 = arith.constant 0 : index
    %c0_7 = arith.constant 0 : index
    %c0_8 = arith.constant 0 : index
    %15 = vector.load %arg3[%c0_6, %c0_7, %c0_8] : memref<1x2x32xf32, #tpu.memory_space<vmem>>, vector<1x2x32xf32>
    %16 = vector.extract_strided_slice %15 {offsets = [0, 0, 0], sizes = [1, 1, 32], strides = [1, 1, 1]} : vector<1x2x32xf32> to vector<1x1x32xf32>
    %17 = vector.extract_strided_slice %15 {offsets = [0, 1, 0], sizes = [1, 1, 32], strides = [1, 1, 1]} : vector<1x2x32xf32> to vector<1x1x32xf32>
    %18 = vector.broadcast %14 : vector<1x8x1xf32> to vector<1x8x32xf32>
    %19 = arith.mulf %6, %18 : vector<1x8x32xf32>
    %20 = vector.broadcast %16 : vector<1x1x32xf32> to vector<1x8x32xf32>
    %21 = arith.mulf %19, %20 : vector<1x8x32xf32>
    %22 = vector.broadcast %17 : vector<1x1x32xf32> to vector<1x8x32xf32>
    %23 = arith.addf %21, %22 : vector<1x8x32xf32>
    %c0_9 = arith.constant 0 : index
    %c0_10 = arith.constant 0 : index
    %c0_11 = arith.constant 0 : index
    %24 = vector.load %arg4[%c0_9, %c0_10, %c0_11] : memref<1x8x32xf32, #tpu.memory_space<vmem>>, vector<1x8x32xf32>
    tpu.vector_store %arg4[%c0_9, %c0_10, %c0_11], %23 {strides = array<i32>} : memref<1x8x32xf32, #tpu.memory_space<vmem>>, vector<1x8x32xf32>,
    return
  }
  func.func @transform_0(%arg0: i32, %arg1: i32) -> (i32, i32, i32) {
    %c0_i32 = arith.constant 0 : i32
    %c0_i32_0 = arith.constant 0 : i32
    return %arg0, %arg1, %c0_i32 : i32, i32, i32
  }
  func.func @transform_1(%arg0: i32, %arg1: i32) -> (i32, i32, i32) {
    %c0_i32 = arith.constant 0 : i32
    %c0_i32_0 = arith.constant 0 : i32
    %c0_i32_1 = arith.constant 0 : i32
    return %arg0, %c0_i32, %c0_i32_0 : i32, i32, i32
  }
  func.func @transform_2(%arg0: i32, %arg1: i32) -> (i32, i32, i32) {
    %c0_i32 = arith.constant 0 : i32
    %c0_i32_0 = arith.constant 0 : i32
    return %arg0, %arg1, %c0_i32 : i32, i32, i32
  }
}

</mosaic_0001>

<llo_original>
// kernel: adaptive_layer_norm_1d.1
$region0: #{adaptive_layer_norm_1d.1}
  #allocation0 [shape = 'u32[]', space=smem, size = 0x4, offset = 0x4, fixed_abs, tag = 'smem constant byte address 0x4 - core index']
  #allocation1 [shape = 'u32[72,128]{1,0:T(1,128)}', space=vmem, size = 0x9000, scoped, tag = 'internal scratch']
  %s0 = inlined_call_operand.vmem [shape: f32[2,8,32], index: 0, kind: input, shape index: {}]
  %s1 = inlined_call_operand.vmem [shape: f32[2,2,32], index: 1, kind: input, shape index: {}]
  %s2 = inlined_call_operand.hbm [shape: f32[2,8,32], index: 2, kind: output, shape index: {}]
  %s3 = sld [smem:[#allocation0]]
  $region41: #{adaptive_layer_norm_1d.1} parent=0
    _
  %s5 = ssub.s32 1, %s3
  %s6 = scalar_select 0, %s5, %s3
  $region1: #{adaptive_layer_norm_1d.1} parent=0
    #allocation2 [shape = 'u8[8192]{0}', space=vmem, size = 0x2000, scoped, tag = 'output window, operand 0']
    #allocation3 [shape = 's32[2]{0}', space=sflag, size = 0x8, scoped, tag = 'scoped memory for adaptive_layer_norm_1d.1']
    %7 = vsyncpa [#allocation3], 0
    %s8 = scalar_lea.sflag [#allocation3], 1
    %9 = vsyncpa %s8, 0
    loop: start=0, step=1, limit=4
    $region2: #{adaptive_layer_norm_1d.1} parent=1 // loop_pre_header
      _
    $region3: #{adaptive_layer_norm_1d.1} parent=1 // loop_header
      %s11 = sphi 0, %s15
      %p12 = scmp.ge.s32.totalorder %s11, 4
      %s18 = sphi 0, %s30
      %s19 = sphi 0, %s26
      %s20 = sphi 0, %s18
      %s21 = sphi 0, %s19
      %s22 = sphi 0, %s20
      %s23 = sphi 0, %s21
      %s35 = sphi 0, %s37
      %s38 = sphi 0, %s35
      %s39 = sphi 0, %s38
      %s55 = sphi 0, %s39
      %s61 = sphi 0, %s63
      %s64 = sphi 0, %s61
      %s65 = sphi 0, %s64
      %s81 = sphi 0, %s65
      %s89 = sphi 0, %s91
      %s92 = sphi 0, %s89
      %s93 = sphi 0, %s92
      %s109 = sphi 0, %s93
    $region4: #{adaptive_layer_norm_1d.1} parent=1 // loop_header_branch
      %14 = sbr.rel (%p12) target = $region8
    $region5: #{adaptive_layer_norm_1d.1} parent=1 // loop_body
      %s16 = ssub.s32 %s11, 1
      %s17 = ssub.s32 %s11, 2
      %s24 = sadd.s32 1, %s19
      %p25 = scmp.ge.s32.totalorder %s24, 1
      %s26 = scalar_select %p25, 0, %s24
      %s27 = sadd.s32 1, %s18
      %s28 = scalar_select %p25, %s27, %s18
      %p29 = scmp.ge.s32.totalorder %s28, 2
      %s30 = scalar_select %p29, 0, %s28
      %s31 = ssub.s32 %s18, %s30
      %s32 = ssub.s32 %s19, %s26
      %s33 = sor.u32 %s31, %s32
      %p34 = scmp.eq.s32.totalorder %s33, 0
      %s36 = sadd.s32 %s35, 1
      %s37 = scalar_select %p34, %s35, %s36
      %p40 = pneg %p34
      %p41 = scmp.eq.s32.totalorder %s11, 1
      %p42 = por %p40, %p41
      %p43 = scmp.ne.s32.totalorder %s35, %s38
      %p44 = scmp.eq.s32.totalorder %s11, 0
      %p45 = por %p43, %p44
      %p46 = scmp.ne.s32.totalorder %s35, %s38
      %p47 = scmp.eq.s32.totalorder %s16, 1
      %p48 = por %p46, %p47
      %p49 = scmp.ne.s32.totalorder %s38, %s39
      %p50 = scmp.eq.s32.totalorder %s16, 0
      %p51 = por %p49, %p50
      %p52 = scmp.ne.s32.totalorder %s38, %s39
      %p53 = scmp.eq.s32.totalorder %s17, 1
      %p54 = por %p52, %p53
      %p56 = scmp.ne.s32.totalorder %s39, %s55
      %p57 = scmp.eq.s32.totalorder %s17, 0
      %p58 = por %p56, %p57
      %s59 = ssub.s32 %s18, %s30
      %p60 = scmp.eq.s32.totalorder %s59, 0
      %s62 = sadd.s32 %s61, 1
      %s63 = scalar_select %p60, %s61, %s62
      %p66 = pneg %p60
      %p67 = scmp.eq.s32.totalorder %s11, 1
      %p68 = por %p66, %p67
      %p69 = scmp.ne.s32.totalorder %s61, %s64
      %p70 = scmp.eq.s32.totalorder %s11, 0
      %p71 = por %p69, %p70
      %p72 = scmp.ne.s32.totalorder %s61, %s64
      %p73 = scmp.eq.s32.totalorder %s16, 1
      %p74 = por %p72, %p73
      %p75 = scmp.ne.s32.totalorder %s64, %s65
      %p76 = scmp.eq.s32.totalorder %s16, 0
      %p77 = por %p75, %p76
      %p78 = scmp.ne.s32.totalorder %s64, %s65
      %p79 = scmp.eq.s32.totalorder %s17, 1
      %p80 = por %p78, %p79
      %p82 = scmp.ne.s32.totalorder %s65, %s81
      %p83 = scmp.eq.s32.totalorder %s17, 0
      %p84 = por %p82, %p83
      %s85 = ssub.s32 %s18, %s30
      %s86 = ssub.s32 %s19, %s26
      %s87 = sor.u32 %s85, %s86
      %p88 = scmp.eq.s32.totalorder %s87, 0
      %s90 = sadd.s32 %s89, 1
      %s91 = scalar_select %p88, %s89, %s90
      %p94 = pneg %p88
      %p95 = scmp.eq.s32.totalorder %s11, 1
      %p96 = por %p94, %p95
      %p97 = scmp.ne.s32.totalorder %s89, %s92
      %p98 = scmp.eq.s32.totalorder %s11, 0
      %p99 = por %p97, %p98
      %p100 = scmp.ne.s32.totalorder %s89, %s92
      %p101 = scmp.eq.s32.totalorder %s16, 1
      %p102 = por %p100, %p101
      %p103 = scmp.ne.s32.totalorder %s92, %s93
      %p104 = scmp.eq.s32.totalorder %s16, 0
      %p105 = por %p103, %p104
      %p106 = scmp.ne.s32.totalorder %s92, %s93
      %p107 = scmp.eq.s32.totalorder %s17, 1
      %p108 = por %p106, %p107
      %p110 = scmp.ne.s32.totalorder %s93, %s109
      %p111 = scmp.eq.s32.totalorder %s17, 0
      %p112 = por %p110, %p111
      %p113 = scmp.le.s32.totalorder 1, %s11
      %p114 = scmp.lt.s32.totalorder %s11, 3
      %p115 = pnand %p113, %p114
      %p116 = pneg %p115
      // Predicated region
      $region9: #{adaptive_layer_norm_1d.1} parent=5 // pred_check
        _
      $region10: #{adaptive_layer_norm_1d.1} parent=5 // pred_check_branch
        %118 = sbr.rel (%p115) target = $region12
      $region11: #{adaptive_layer_norm_1d.1} parent=5 // pred_region
        %s119 = ssub.s32 %s11, 1
      $region12: #{adaptive_layer_norm_1d.1} parent=5 // pred_fallthru
        _
      %p120 = scmp.lt.s32.totalorder %s11, 2
      // Predicated region
      $region13: #{adaptive_layer_norm_1d.1} parent=5 // pred_check
        %p121 = pneg %p120
      $region14: #{adaptive_layer_norm_1d.1} parent=5 // pred_check_branch
        %123 = sbr.rel (%p121) target = $region16
      $region15: #{adaptive_layer_norm_1d.1} parent=5 // pred_region
        // Predicated region
        $region17: #{adaptive_layer_norm_1d.1} parent=15 // pred_check
          %p124 = pneg %p45
        $region18: #{adaptive_layer_norm_1d.1} parent=15 // pred_check_branch
          %126 = sbr.rel (%p124) target = $region20
        $region19: #{adaptive_layer_norm_1d.1} parent=15 // pred_region
          %p127 = scmp.lt.s32.totalorder %s18, 1
          %s128 = scalar_select %p127, %s18, 1
          %p129 = scmp.lt.s32.totalorder %s19, 0
          %s130 = scalar_select %p129, %s19, 0
          %s131 = sadd.s32 %s130, %s128
          %s132 = smul.addr %s131, 8
          %s133 = scalar_lea.vmem %s0, %s132
        $region20: #{adaptive_layer_norm_1d.1} parent=15 // pred_fallthru
          _
        // Predicated region
        $region21: #{adaptive_layer_norm_1d.1} parent=15 // pred_check
          %p134 = pneg %p71
        $region22: #{adaptive_layer_norm_1d.1} parent=15 // pred_check_branch
          %136 = sbr.rel (%p134) target = $region24
        $region23: #{adaptive_layer_norm_1d.1} parent=15 // pred_region
          %p137 = scmp.lt.s32.totalorder %s18, 1
          %s138 = scalar_select %p137, %s18, 1
          %s139 = smul.addr %s138, 2
          %s140 = scalar_lea.vmem %s1, %s139
        $region24: #{adaptive_layer_norm_1d.1} parent=15 // pred_fallthru
          _
      $region16: #{adaptive_layer_norm_1d.1} parent=5 // pred_fallthru
        _
      %p141 = scmp.le.s32.totalorder 1, %s11
      %p142 = scmp.lt.s32.totalorder %s11, 3
      %p143 = pnand %p141, %p142
      %p144 = pneg %p143
      // Predicated region
      $region25: #{adaptive_layer_norm_1d.1} parent=5 // pred_check
        _
      $region26: #{adaptive_layer_norm_1d.1} parent=5 // pred_check_branch
        %146 = sbr.rel (%p143) target = $region28
      $region27: #{adaptive_layer_norm_1d.1} parent=5 // pred_region
        %s147 = ssub.s32 %s11, 1
        %p148 = scmp.lt.s32.totalorder %s20, 1
        %s149 = scalar_select %p148, %s20, 1
        %p150 = scmp.lt.s32.totalorder %s21, 0
        %s151 = scalar_select %p150, %s21, 0
        %s152 = sadd.s32 %s151, %s149
        %s153 = smul.addr %s152, 8
        %s154 = scalar_lea.vmem %s0, %s153
        %p155 = pneg %p51
        %p156 = pneg %p48
        %p157 = scmp.lt.s32.totalorder %s20, 1
        %s158 = scalar_select %p157, %s20, 1
        %s159 = smul.addr %s158, 2
        %s160 = scalar_lea.vmem %s1, %s159
        %p161 = pneg %p77
        %p162 = pneg %p74
        %p163 = pneg %p105
        %p164 = pneg %p102
        %s165 = sand.u32 %s92, 1
        %s166 = scalar_lea.sflag [#allocation3], %s165
        %s167 = sand.u32 %s92, 1
        %s168 = smul.addr %s167, 8
        %s169 = scalar_lea.vmem [#allocation2], %s168
        %p170 = scmp.lt.s32.totalorder %s20, 1
        %s171 = scalar_select %p170, %s20, 1
        %p172 = scmp.lt.s32.totalorder %s21, 0
        %s173 = scalar_select %p172, %s21, 0
        %s174 = sadd.s32 %s173, %s171
        %s175 = smul.addr %s174, 8
        %s176 = scalar_lea.vmem %s0, %s175
        %p177 = scmp.lt.s32.totalorder %s20, 1
        %s178 = scalar_select %p177, %s20, 1
        %s179 = smul.addr %s178, 2
        %s180 = scalar_lea.vmem %s1, %s179
        %v181 = vld [vmem:[%s176] sm:$0xff]
        %vm182 = vcmask 261120
        %v183 = vsel %vm182, %v181, 0.0
        %184 = vadd.xlane.f32.xlu0 %v183
        %v185 = vpop.xlane.xlu0 %184
        %v186 = vrcp.pop 32.0
        %v187 = vmul.f32 32.0, %v186
        %v188 = vsub.f32 1.0, %v187
        %v189 = vmul.f32 %v186, %v188
        %v190 = vadd.f32 %v186, %v189
        %vm191 = vweird.f32 %v186
        %v192 = vsel %vm191, %v186, %v190
        %v193 = vmul.f32 %v185, %v192
        %v194 = vsub.f32 %v181, %v193
        %v195 = vmul.f32 %v194, %v194
        %v196 = vsel %vm182, %v195, 0.0
        %197 = vadd.xlane.f32.xlu0 %v196
        %v198 = vpop.xlane.xlu0 %197
        %v199 = vmul.f32 %v198, %v192
        %v200 = vadd.f32 %v199, 1e-05
        %v201 = vrsqrt.pop %v200
        %v202 = vmul.f32 %v201, %v200
        %v203 = vmul.f32 %v202, %v201
        %v204 = vmul.f32 0.5, %v203
        %v205 = vsub.f32 1.5, %v204
        %v206 = vmul.f32 %v201, %v205
        %vm207 = vweird.f32 %v200
        %vm208 = vweird.f32 %v201
        %vm209 = vmor %vm207, %vm208
        %v210 = vsel %vm209, %v201, %v206
        %v211 = vld [vmem:[%s180] sm:$0x3]
        %v212 = vmul.f32 %v194, %v210
        %v213 = vperm.slane %v211, 0
        %v214 = vmul.f32 %v212, %v213
        %v215 = vperm.slane %v211, 1
        %v216 = vadd.f32 %v214, %v215
        %217 = vst.msk [vmem:[%s169] sm:$0xff] %vm182, %v216
        %s218 = sand.u32 %s92, 1
        %s219 = scalar_lea.sflag [#allocation3], %s218
        %s220 = sand.u32 %s92, 1
        %s221 = smul.addr %s220, 8
        %s222 = scalar_lea.vmem [#allocation2], %s221
        // Predicated region
        $region29: #{adaptive_layer_norm_1d.1} parent=27 // pred_check
          %p223 = pneg %p102
        $region30: #{adaptive_layer_norm_1d.1} parent=27 // pred_check_branch
          %225 = sbr.rel (%p223) target = $region32
        $region31: #{adaptive_layer_norm_1d.1} parent=27 // pred_region
          %227 = vsyncadd %s219, 0
          %s228 = sadd.s32 %s21, %s20
          %s229 = smul.addr %s228, 8
          %s230 = scalar_lea.hbm %s2, %s229
          %s232 = sshll.u32 %s222, 4
          %s233 = int_to_ptr.vmem [resolvable:$true] %s232
          %s234 = sshll.u32 %s230, 4
          %s235 = int_to_ptr.hbm [resolvable:$true] %s234
          %237 = dma.vmem_to_hbm [thread:$0]  %s233, 128, %s235, %s219
        $region32: #{adaptive_layer_norm_1d.1} parent=27 // pred_fallthru
          _
      $region28: #{adaptive_layer_norm_1d.1} parent=5 // pred_fallthru
        _
      %p238 = scmp.le.s32.totalorder 2, %s11
      // Predicated region
      $region33: #{adaptive_layer_norm_1d.1} parent=5 // pred_check
        %p239 = pneg %p238
      $region34: #{adaptive_layer_norm_1d.1} parent=5 // pred_check_branch
        %241 = sbr.rel (%p239) target = $region36
      $region35: #{adaptive_layer_norm_1d.1} parent=5 // pred_region
        %s242 = ssub.s32 %s11, 2
        // Predicated region
        $region37: #{adaptive_layer_norm_1d.1} parent=35 // pred_check
          %p243 = pneg %p108
        $region38: #{adaptive_layer_norm_1d.1} parent=35 // pred_check_branch
          %245 = sbr.rel (%p243) target = $region40
        $region39: #{adaptive_layer_norm_1d.1} parent=35 // pred_region
          %s246 = sand.u32 %s93, 1
          %s247 = scalar_lea.sflag [#allocation3], %s246
          %s248 = sand.u32 %s93, 1
          %s249 = smul.addr %s248, 8
          %s250 = scalar_lea.vmem [#allocation2], %s249
          %252 = dma.done %s247, 128
        $region40: #{adaptive_layer_norm_1d.1} parent=35 // pred_fallthru
          _
      $region36: #{adaptive_layer_norm_1d.1} parent=5 // pred_fallthru
        _
    $region6: #{adaptive_layer_norm_1d.1} parent=1 // loop_footer
      %s15 = sadd.s32 1, %s11
    $region7: #{adaptive_layer_norm_1d.1} parent=1 // loop_footer_branch
      %10 = sbr.rel target = $region3
    $region8: #{adaptive_layer_norm_1d.1} parent=1 // loop_exit
      _
    %253 = vsyncpa [#allocation3], 1
    %s254 = scalar_lea.sflag [#allocation3], 1
    %255 = vsyncpa %s254, 1

</llo_original>
